<compile_context>
chip_gen: v5e
topology: v5e:2x2
jax: 0.10.0
libtpu: 0.0.40
codegen_flags: <defaults>
</compile_context>

<pallas_src>
import jax
import jax.numpy as jnp
from jax.experimental import pallas as pl
from jax.experimental.pallas import tpu as pltpu


# ---------------------------------------------------------------------------
# Kernel body (shared by both layouts): out = x * scale + shift, broadcast.
# 2-D path:  x (n_tile, C*HW),  scale/shift (1, C*HW)
# 3-D path:  x (1, c_tile, hw_tile),  scale/shift (1, c_tile, 1)
# ---------------------------------------------------------------------------
def _frozen_bn_kernel(x_ref, scale_ref, shift_ref, o_ref):
    o_ref[...] = (x_ref[...] * scale_ref[...] + shift_ref[...]).astype(o_ref.dtype)


def _default_target_block_bytes():
    """~2 MiB everywhere; ~4 MiB on v6e/v7x where per-step overhead matters."""
    try:
        kind = jax.devices()[0].device_kind.lower()
    except Exception:  # pragma: no cover - device query should not be fatal
        return 2 * 1024 * 1024
    if ("v6" in kind) or ("v7" in kind):
        return 4 * 1024 * 1024
    return 2 * 1024 * 1024


def _choose_n_tile(N, CHW, max_elems):
    """Images per block for the (N, C*HW) layout.

    Legality: leading block dim must be a multiple of 8 or equal to N.
    """
    n_tile = max(1, max_elems // max(1, CHW))
    if n_tile >= N:
        return N
    if N <= 8:
        return N
    return max(8, (n_tile // 8) * 8)


def _choose_tiles_3d(C, HW, max_elems):
    """(c_tile, hw_tile) for the (N, C, H*W) layout.

    Only reached when one image's (C, HW) slab exceeds the budget, so we
    always have to split C (and possibly HW).  Prefer a c_tile that is a
    multiple of 8 AND a divisor of C (even grid, no padded edge block).
    hw_tile is a multiple of 128 (or the full HW).
    """
    if C <= 8:
        c_tile = C
    else:
        budget_c = max_elems // HW
        if budget_c >= 8:
            top = min(C, (budget_c // 8) * 8)
            c_tile = None
            for cand in range(top, 7, -8):
                if C % cand == 0:
                    c_tile = cand
                    break
            if c_tile is None:           # no multiple-of-8 divisor fits
                c_tile = top             # masked edge channel block
        else:
            c_tile = 8                   # even 8 rows exceed budget -> tile HW
    if c_tile * HW <= max_elems:
        return c_tile, HW
    hw_tile = max(128, ((max_elems // c_tile) // 128) * 128)
    return c_tile, hw_tile


def frozen_batch_norm_2d(x_nchw, weight, bias, running_mean, running_var,
                         *, eps=1e-5, target_block_bytes=None):
    """FrozenBatchNorm2d forward.  x_nchw: (N, C, H, W); params: (C,)."""
    N, C, H, W = x_nchw.shape
    HW = H * W
    CHW = C * HW
    dtype = x_nchw.dtype
    itemsize = jnp.dtype(dtype).itemsize

    if target_block_bytes is None:
        target_block_bytes = _default_target_block_bytes()
    max_elems = max(1024, target_block_bytes // itemsize)

    # Frozen-stat affine, computed once in float32 regardless of x's dtype.
    w32 = weight.astype(jnp.float32)
    b32 = bias.astype(jnp.float32)
    rm32 = running_mean.astype(jnp.float32)
    rv32 = running_var.astype(jnp.float32)
    scale = w32 * jax.lax.rsqrt(rv32 + eps)   # (C,)
    shift = b32 - rm32 * scale                # (C,)

    cost = pl.CostEstimate(
        flops=2 * N * CHW,
        transcendentals=0,
        bytes_accessed=2 * N * CHW * itemsize + 2 * C * 4,
    )

    if CHW <= max_elems:
        # ------------------------------------------------------------------
        # Small per-image slab (also covers HW < 128 stages): (N, C*HW) view,
        # fold several images into one lane-dense block.
        # ------------------------------------------------------------------
        x2d = x_nchw.reshape(N, CHW)                                  # free view
        scale_row = jnp.broadcast_to(scale[:, None], (C, HW)).reshape(1, CHW)
        shift_row = jnp.broadcast_to(shift[:, None], (C, HW)).reshape(1, CHW)

        n_tile = _choose_n_tile(N, CHW, max_elems)
        grid = (pl.cdiv(N, n_tile),)
        block_bytes = n_tile * CHW * itemsize
        vmem_limit = int(4 * block_bytes + 8 * 1024 * 1024)

        out2d = pl.pallas_call(
            _frozen_bn_kernel,
            out_shape=jax.ShapeDtypeStruct((N, CHW), dtype),
            grid_spec=pltpu.PrefetchScalarGridSpec(
                num_scalar_prefetch=0,
                grid=grid,
                in_specs=[
                    pl.BlockSpec((n_tile, CHW), lambda n: (n, 0)),   # x
                    pl.BlockSpec((1, CHW), lambda n: (0, 0)),        # scale (1 fetch)
                    pl.BlockSpec((1, CHW), lambda n: (0, 0)),        # shift (1 fetch)
                ],
                out_specs=pl.BlockSpec((n_tile, CHW), lambda n: (n, 0)),
            ),
            compiler_params=pltpu.CompilerParams(
                dimension_semantics=("parallel",),
                vmem_limit_bytes=vmem_limit),
            cost_estimate=cost,
        )(x2d, scale_row, shift_row)
        return out2d.reshape(N, C, H, W)

    # ----------------------------------------------------------------------
    # Large per-image slab: (N, C, H*W) view, per-channel affine columns.
    # ----------------------------------------------------------------------
    x3d = x_nchw.reshape(N, C, HW)                                    # free view
    scale_col = scale.reshape(1, C, 1)
    shift_col = shift.reshape(1, C, 1)

    c_tile, hw_tile = _choose_tiles_3d(C, HW, max_elems)
    grid = (N, pl.cdiv(C, c_tile), pl.cdiv(HW, hw_tile))
    block_bytes = c_tile * hw_tile * itemsize
    vmem_limit = int(4 * block_bytes + 8 * 1024 * 1024)

    out3d = pl.pallas_call(
        _frozen_bn_kernel,
        out_shape=jax.ShapeDtypeStruct((N, C, HW), dtype),
        grid_spec=pltpu.PrefetchScalarGridSpec(
            num_scalar_prefetch=0,
            grid=grid,
            in_specs=[
                pl.BlockSpec((1, c_tile, hw_tile),
                             lambda n, ci, hi: (n, ci, hi)),          # x tile
                pl.BlockSpec((1, c_tile, 1),
                             lambda n, ci, hi: (0, ci, 0)),           # scale
                pl.BlockSpec((1, c_tile, 1),
                             lambda n, ci, hi: (0, ci, 0)),           # shift
            ],
            out_specs=pl.BlockSpec((1, c_tile, hw_tile),
                                   lambda n, ci, hi: (n, ci, hi)),
        ),
        compiler_params=pltpu.CompilerParams(
            dimension_semantics=("parallel", "parallel", "parallel"),
            vmem_limit_bytes=vmem_limit),
        cost_estimate=cost,
    )(x3d, scale_col, shift_col)
    return out3d.reshape(N, C, H, W)


def _reference(x, w, b, rm, rv, eps=1e-5):
    scale = (w * jax.lax.rsqrt(rv + eps)).reshape(1, -1, 1, 1)
    shift = (b - rm * w * jax.lax.rsqrt(rv + eps)).reshape(1, -1, 1, 1)
    return x * scale + shift


if __name__ == "__main__":
    key = jax.random.PRNGKey(0)
    N, C, H, W = 2, 4, 16, 16

    kx, kw, kb, km, kv = jax.random.split(key, 5)
    x = jax.random.normal(kx, (N, C, H, W), dtype=jnp.float32)

    # Deterministic "frozen" parameters, perturbed from the module defaults
    # (ones/zeros) so the affine is non-trivial.
    weight = jnp.ones((C,), jnp.float32) + 0.1 * jax.random.normal(kw, (C,))
    bias = 0.1 * jax.random.normal(kb, (C,))
    running_mean = 0.1 * jax.random.normal(km, (C,))
    running_var = jnp.ones((C,), jnp.float32) + 0.05 * jnp.abs(
        jax.random.normal(kv, (C,)))

    out = frozen_batch_norm_2d(x, weight, bias, running_mean, running_var)
    out = jax.block_until_ready(out)

    ref = _reference(x, weight, bias, running_mean, running_var)
    assert out.shape == (N, C, H, W)
    assert jnp.allclose(out, ref, atol=1e-5, rtol=1e-5), "mismatch vs reference"

    # Also exercise the large-slab (3-D tiled) path with a tiny block budget
    # to make sure both layouts compile and agree with the reference.
    out_big = frozen_batch_norm_2d(x, weight, bias, running_mean, running_var,
                                   target_block_bytes=2048)
    out_big = jax.block_until_ready(out_big)
    assert jnp.allclose(out_big, ref, atol=1e-5, rtol=1e-5), "3D-path mismatch"

    print("KERNEL_OK")
</pallas_src>

<mosaic_0001>
module attributes {stable_mosaic.version = 11 : i64} {
  func.func @_frozen_bn_kernel(%arg0: i32, %arg1: memref<2x1024xf32, #tpu.memory_space<vmem>>, %arg2: memref<1x1024xf32, #tpu.memory_space<vmem>>, %arg3: memref<1x1024xf32, #tpu.memory_space<vmem>>, %arg4: memref<2x1024xf32, #tpu.memory_space<vmem>>) attributes {dimension_semantics = [#tpu.dimension_semantics<parallel>], iteration_bounds = array<i64: 1>, scalar_prefetch = 0 : i64, scratch_operands = 0 : i64, tpu.core_type = #tpu.core_type<tc>, window_params = [{transform_indices = @transform_0, window_bounds = array<i64: 2, 1024>}, {pipeline_mode = #tpu.pipeline_mode<synchronous>, transform_indices = @transform_1, window_bounds = array<i64: 1, 1024>}, {pipeline_mode = #tpu.pipeline_mode<synchronous>, transform_indices = @transform_2, window_bounds = array<i64: 1, 1024>}, {transform_indices = @transform_3, window_bounds = array<i64: 2, 1024>}]} {
    %c0 = arith.constant 0 : index
    %c0_0 = arith.constant 0 : index
    %0 = vector.load %arg1[%c0, %c0_0] : memref<2x1024xf32, #tpu.memory_space<vmem>>, vector<2x1024xf32>
    %c0_1 = arith.constant 0 : index
    %c0_2 = arith.constant 0 : index
    %1 = vector.load %arg2[%c0_1, %c0_2] : memref<1x1024xf32, #tpu.memory_space<vmem>>, vector<1x1024xf32>
    %2 = vector.broadcast %1 : vector<1x1024xf32> to vector<2x1024xf32>
    %3 = arith.mulf %0, %2 : vector<2x1024xf32>
    %c0_3 = arith.constant 0 : index
    %c0_4 = arith.constant 0 : index
    %4 = vector.load %arg3[%c0_3, %c0_4] : memref<1x1024xf32, #tpu.memory_space<vmem>>, vector<1x1024xf32>
    %5 = vector.broadcast %4 : vector<1x1024xf32> to vector<2x1024xf32>
    %6 = arith.addf %3, %5 : vector<2x1024xf32>
    %c0_5 = arith.constant 0 : index
    %c0_6 = arith.constant 0 : index
    %7 = vector.load %arg4[%c0_5, %c0_6] : memref<2x1024xf32, #tpu.memory_space<vmem>>, vector<2x1024xf32>
    tpu.vector_store %arg4[%c0_5, %c0_6], %6 {strides = array<i32>} : memref<2x1024xf32, #tpu.memory_space<vmem>>, vector<2x1024xf32>,
    return
  }
  func.func @transform_0(%arg0: i32) -> (i32, i32) {
    %c0_i32 = arith.constant 0 : i32
    %c0_i32_0 = arith.constant 0 : i32
    return %arg0, %c0_i32 : i32, i32
  }
  func.func @transform_1(%arg0: i32) -> (i32, i32) {
    %c0_i32 = arith.constant 0 : i32
    %c0_i32_0 = arith.constant 0 : i32
    %c0_i32_1 = arith.constant 0 : i32
    return %c0_i32, %c0_i32_0 : i32, i32
  }
  func.func @transform_2(%arg0: i32) -> (i32, i32) {
    %c0_i32 = arith.constant 0 : i32
    %c0_i32_0 = arith.constant 0 : i32
    %c0_i32_1 = arith.constant 0 : i32
    return %c0_i32, %c0_i32_0 : i32, i32
  }
  func.func @transform_3(%arg0: i32) -> (i32, i32) {
    %c0_i32 = arith.constant 0 : i32
    %c0_i32_0 = arith.constant 0 : i32
    return %arg0, %c0_i32 : i32, i32
  }
}

</mosaic_0001>

<llo_original>
// kernel: tpu_custom_call.1
$region0: #{tpu_custom_call.1}
  #allocation0 [shape = 'u32[]', space=smem, size = 0x4, offset = 0x4, fixed_abs, tag = 'smem constant byte address 0x4 - core index']
  #allocation1 [shape = 'u32[72,128]{1,0:T(1,128)}', space=vmem, size = 0x9000, scoped, tag = 'internal scratch']
  %s0 = inlined_call_operand.hbm [shape: f32[2,1024], index: 0, kind: input, shape index: {}]
  %s1 = inlined_call_operand.hbm [shape: f32[1,1024], index: 1, kind: input, shape index: {}]
  %s2 = inlined_call_operand.hbm [shape: f32[1,1024], index: 2, kind: input, shape index: {}]
  %s3 = inlined_call_operand.hbm [shape: f32[2,1024], index: 3, kind: output, shape index: {}]
  %s4 = sld [smem:[#allocation0]]
  $region34: #{tpu_custom_call.1} parent=0
    _
  %s6 = ssub.s32 1, %s4
  %s7 = scalar_select 0, %s6, %s4
  $region1: #{tpu_custom_call.1} parent=0
    #allocation2 [shape = 'u8[8192]{0}', space=vmem, size = 0x2000, scoped, tag = 'input window, operand 0, single buffered']
    #allocation3 [shape = 's32[1]{0}', space=sflag, size = 0x4, scoped, tag = 'scoped memory for tpu_custom_call.1']
    #allocation4 [shape = 's32[1]{0}', space=sflag, size = 0x4, scoped, tag = 'scoped memory for tpu_custom_call.1']
    #allocation5 [shape = 'u8[4096]{0}', space=vmem, size = 0x1000, scoped, tag = 'input window, operand 1, single buffered']
    #allocation6 [shape = 's32[1]{0}', space=sflag, size = 0x4, scoped, tag = 'scoped memory for tpu_custom_call.1']
    #allocation7 [shape = 'u8[4096]{0}', space=vmem, size = 0x1000, scoped, tag = 'input window, operand 2, single buffered']
    #allocation8 [shape = 'u8[8192]{0}', space=vmem, size = 0x2000, scoped, tag = 'output window, operand 0, single buffered']
    %8 = vsyncpa [#allocation3], 0
    %9 = vsyncpa [#allocation6], 0
    %10 = vsyncpa [#allocation4], 0
    // Predicated region
    $region2: #{tpu_custom_call.1} parent=1 // pred_check
      _
    $region3: #{tpu_custom_call.1} parent=1 // pred_check_branch
      %12 = sbr.rel (0) target = $region5
    $region4: #{tpu_custom_call.1} parent=1 // pred_region
      %14 = vsyncadd [#allocation3], 0
      %s16 = sshll.u32 %s0, 4
      %s17 = int_to_ptr.hbm [resolvable:$true] %s16
      %s18 = sshll.u32 [#allocation2], 4
      %s19 = int_to_ptr.vmem [resolvable:$true] %s18
      %21 = dma.hbm_to_vmem [thread:$0]  %s17, 256, %s19, [#allocation3]
    $region5: #{tpu_custom_call.1} parent=1 // pred_fallthru
      _
    // Predicated region
    $region6: #{tpu_custom_call.1} parent=1 // pred_check
      _
    $region7: #{tpu_custom_call.1} parent=1 // pred_check_branch
      %23 = sbr.rel (0) target = $region9
    $region8: #{tpu_custom_call.1} parent=1 // pred_region
      %25 = vsyncadd [#allocation6], 0
      %s27 = sshll.u32 %s1, 4
      %s28 = int_to_ptr.hbm [resolvable:$true] %s27
      %s29 = sshll.u32 [#allocation5], 4
      %s30 = int_to_ptr.vmem [resolvable:$true] %s29
      %32 = dma.hbm_to_vmem [thread:$0]  %s28, 128, %s30, [#allocation6]
    $region9: #{tpu_custom_call.1} parent=1 // pred_fallthru
      _
    // Predicated region
    $region10: #{tpu_custom_call.1} parent=1 // pred_check
      _
    $region11: #{tpu_custom_call.1} parent=1 // pred_check_branch
      %34 = sbr.rel (0) target = $region13
    $region12: #{tpu_custom_call.1} parent=1 // pred_region
      %36 = vsyncadd [#allocation6], 0
      %s38 = sshll.u32 %s2, 4
      %s39 = int_to_ptr.hbm [resolvable:$true] %s38
      %s40 = sshll.u32 [#allocation7], 4
      %s41 = int_to_ptr.vmem [resolvable:$true] %s40
      %43 = dma.hbm_to_vmem [thread:$0]  %s39, 128, %s41, [#allocation6]
    $region13: #{tpu_custom_call.1} parent=1 // pred_fallthru
      _
    // Predicated region
    $region14: #{tpu_custom_call.1} parent=1 // pred_check
      _
    $region15: #{tpu_custom_call.1} parent=1 // pred_check_branch
      %45 = sbr.rel (0) target = $region17
    $region16: #{tpu_custom_call.1} parent=1 // pred_region
      %47 = dma.done [#allocation3], 256
    $region17: #{tpu_custom_call.1} parent=1 // pred_fallthru
      _
    // Predicated region
    $region18: #{tpu_custom_call.1} parent=1 // pred_check
      _
    $region19: #{tpu_custom_call.1} parent=1 // pred_check_branch
      %49 = sbr.rel (0) target = $region21
    $region20: #{tpu_custom_call.1} parent=1 // pred_region
      %51 = dma.done [#allocation6], 128
    $region21: #{tpu_custom_call.1} parent=1 // pred_fallthru
      _
    // Predicated region
    $region22: #{tpu_custom_call.1} parent=1 // pred_check
      _
    $region23: #{tpu_custom_call.1} parent=1 // pred_check_branch
      %53 = sbr.rel (0) target = $region25
    $region24: #{tpu_custom_call.1} parent=1 // pred_region
      %55 = dma.done [#allocation6], 128
    $region25: #{tpu_custom_call.1} parent=1 // pred_fallthru
      _
    %v56 = vld [vmem:[#allocation2] sm:$0xff]
    %v57 = vld [vmem:[#allocation2 + $0x8] sm:$0xff]
    %v58 = vld [vmem:[#allocation5] sm:$0xff]
    %v60 = vperm.slane %v58, 0
    %v61 = vperm.slane %v58, 1
    %v62 = vperm.slane %v58, 2
    %v63 = vperm.slane %v58, 3
    %v64 = vperm.slane %v58, 4
    %v65 = vperm.slane %v58, 5
    %v66 = vperm.slane %v58, 6
    %v67 = vperm.slane %v58, 7
    %v68 = vrot.slane %v61, 6
    %v69 = vrot.slane %v62, 4
    %v70 = vrot.slane %v63, 2
    %v71 = vrot.slane %v65, 6
    %v72 = vrot.slane %v66, 4
    %v73 = vrot.slane %v67, 2
    %vm74 = vcmask 1041408
    %v75 = vsel %vm74, %v60, %v68
    %vm76 = vcmask 1045508
    %v77 = vsel %vm76, %v69, %v70
    %vm78 = vcmask 1043456
    %v79 = vsel %vm78, %v75, %v77
    %v80 = vsel %vm74, %v64, %v71
    %v81 = vsel %vm76, %v72, %v73
    %v82 = vsel %vm78, %v80, %v81
    %v85 = vmul.f32 %v56, %v79
    %v86 = vmul.f32 %v57, %v82
    %v87 = vld [vmem:[#allocation7] sm:$0xff]
    %v89 = vperm.slane %v87, 0
    %v90 = vperm.slane %v87, 1
    %v91 = vperm.slane %v87, 2
    %v92 = vperm.slane %v87, 3
    %v93 = vperm.slane %v87, 4
    %v94 = vperm.slane %v87, 5
    %v95 = vperm.slane %v87, 6
    %v96 = vperm.slane %v87, 7
    %v97 = vrot.slane %v90, 6
    %v98 = vrot.slane %v91, 4
    %v99 = vrot.slane %v92, 2
    %v100 = vrot.slane %v94, 6
    %v101 = vrot.slane %v95, 4
    %v102 = vrot.slane %v96, 2
    %v103 = vsel %vm74, %v89, %v97
    %v104 = vsel %vm76, %v98, %v99
    %v105 = vsel %vm78, %v103, %v104
    %v106 = vsel %vm74, %v93, %v100
    %v107 = vsel %vm76, %v101, %v102
    %v108 = vsel %vm78, %v106, %v107
    %v111 = vadd.f32 %v85, %v105
    %v112 = vadd.f32 %v86, %v108
    %113 = vst [vmem:[#allocation8] sm:$0xff] %v111
    %114 = vst [vmem:[#allocation8 + $0x8] sm:$0xff] %v112
    // Predicated region
    $region26: #{tpu_custom_call.1} parent=1 // pred_check
      _
    $region27: #{tpu_custom_call.1} parent=1 // pred_check_branch
      %116 = sbr.rel (0) target = $region29
    $region28: #{tpu_custom_call.1} parent=1 // pred_region
      %118 = vsyncadd [#allocation4], 0
      %s120 = sshll.u32 [#allocation8], 4
      %s121 = int_to_ptr.vmem [resolvable:$true] %s120
      %s122 = sshll.u32 %s3, 4
      %s123 = int_to_ptr.hbm [resolvable:$true] %s122
      %125 = dma.vmem_to_hbm [thread:$0]  %s121, 256, %s123, [#allocation4]
    $region29: #{tpu_custom_call.1} parent=1 // pred_fallthru
      _
    // Predicated region
    $region30: #{tpu_custom_call.1} parent=1 // pred_check
      _
    $region31: #{tpu_custom_call.1} parent=1 // pred_check_branch
      %127 = sbr.rel (0) target = $region33
    $region32: #{tpu_custom_call.1} parent=1 // pred_region
      %129 = dma.done [#allocation4], 256
    $region33: #{tpu_custom_call.1} parent=1 // pred_fallthru
      _
    %130 = vsyncpa [#allocation3], 1
    %131 = vsyncpa [#allocation6], 1
    %132 = vsyncpa [#allocation4], 1

</llo_original>
